<compile_context>
chip_gen: v6e
topology: v6e:2x2x1
jax: 0.10.0
libtpu: 0.0.40
codegen_flags: <defaults>
</compile_context>

<pallas_src>
import jax
import jax.numpy as jnp
from jax.experimental import pallas as pl
from jax.experimental.pallas import tpu as pltpu

BS, HIST, FIN, FOBS, R = 2, 8, 16, 32, 16


def statenet_kernel(x_ref, wobs_ref, bobs_ref, wmain_ref, bmain_ref, out_ref):
    # x_ref: (BS*HIST, FIN) -- batch pre-flattened in the wrapper.
    # ---- observation_net: one fused Linear + ReLU over all timesteps ----
    h = jnp.dot(x_ref[...], wobs_ref[...], preferred_element_type=jnp.float32)
    h = jnp.maximum(h + bobs_ref[...], 0.0)                    # (BS*HIST, FOBS)

    # ---- LamaPooling (static unroll over the tiny batch) ----
    rows = []
    for b in range(BS):
        hb = h[b * HIST:(b + 1) * HIST]                        # (HIST, FOBS)
        ht = hb[:HIST - 1]                                     # x[:, :-1, :]
        p_last = hb[HIST - 1:HIST]                             # (1, FOBS)
        p_avg = jnp.mean(ht, axis=0, keepdims=True)            # (1, FOBS)
        p_max = jnp.max(ht, axis=0, keepdims=True)             # (1, FOBS)
        # TemporalAttentionPooling with nn.Softmax(dim=1): softmax over the
        # size-1 conv channel == 1.0 exactly, so the attention-weighted sum is
        # a plain sum (bit-identical in fp32); the degenerate conv is elided.
        p_attn = jnp.sum(ht, axis=0, keepdims=True)            # (1, FOBS)
        # Concat order matches LamaPooling: ['last','avg','max','softmax'].
        rows.append(jnp.concatenate([p_last, p_avg, p_max, p_attn], axis=1))
    agg = jnp.concatenate(rows, axis=0)                        # (BS, 4*FOBS)=(2,128)

    # ---- main_net: single 128-deep contraction, lane-dense output store ----
    out_ref[...] = (jnp.dot(agg, wmain_ref[...],
                            preferred_element_type=jnp.float32)
                    + bmain_ref[...])                          # (BS, R)


def statenet_pallas(x, w_obs, b_obs, w_attn, b_attn, w_main, b_main):
    # w_attn / b_attn are accepted for interface parity with the PyTorch module
    # but are mathematically inert (softmax over a size-1 axis == 1.0), so they
    # are not passed to the kernel.
    del w_attn, b_attn
    x2 = x.reshape(BS * HIST, FIN)                 # free layout plumbing
    w_main_flat = w_main.reshape(4 * FOBS, R)      # chunk order: last,avg,max,softmax
    return pl.pallas_call(
        statenet_kernel,
        out_shape=jax.ShapeDtypeStruct((BS, R), jnp.float32),
        in_specs=[
            pl.BlockSpec((BS * HIST, FIN), lambda: (0, 0)),
            pl.BlockSpec((FIN, FOBS), lambda: (0, 0)),
            pl.BlockSpec((1, FOBS), lambda: (0, 0)),
            pl.BlockSpec((4 * FOBS, R), lambda: (0, 0)),
            pl.BlockSpec((1, R), lambda: (0, 0)),
        ],
        out_specs=pl.BlockSpec((BS, R), lambda: (0, 0)),
    )(x2, w_obs, b_obs, w_main_flat, b_main)


def statenet_ref(x, w_obs, b_obs, w_attn, b_attn, w_main, b_main):
    """Pure-JAX reference mirroring the PyTorch forward (softmax included)."""
    bs, hist, fin = x.shape
    h = jnp.maximum(x.reshape(-1, fin) @ w_obs + b_obs, 0.0).reshape(bs, hist, -1)
    last = h[:, -1:, :]
    ht = h[:, :-1, :]
    avg = ht.mean(1, keepdims=True)
    mx = ht.max(1, keepdims=True)
    scores = jnp.einsum('blf,fo->blo', ht, w_attn) + b_attn     # (bs, L-1, 1)
    attn = jax.nn.softmax(scores, axis=2)                       # size-1 axis -> ones
    p_attn = jnp.sum(attn * ht, axis=1, keepdims=True)
    agg = jnp.concatenate([last, avg, mx, p_attn], axis=1).reshape(bs, -1)
    return agg @ w_main.reshape(4 * FOBS, R) + b_main


if __name__ == "__main__":
    key = jax.random.PRNGKey(0)
    ks = jax.random.split(key, 7)

    # Deterministic synthetic parameters (linear weights stored as (in, out)).
    w_obs = jax.random.normal(ks[0], (FIN, FOBS), jnp.float32) * 0.1
    b_obs = jax.random.normal(ks[1], (1, FOBS), jnp.float32) * 0.01
    # outer_init-style small uniform for the attention conv (inert; see above)
    w_attn = jax.random.uniform(ks[2], (FOBS, 1), jnp.float32, -3e-3, 3e-3)
    b_attn = jax.random.uniform(ks[3], (1, 1), jnp.float32, -3e-3, 3e-3)
    w_main = jax.random.normal(ks[4], (4, FOBS, R), jnp.float32) * 0.1
    b_main = jax.random.normal(ks[5], (1, R), jnp.float32) * 0.01

    # Input state: [bs, history_len, in_features]
    x = jax.random.normal(ks[6], (BS, HIST, FIN), jnp.float32)

    out = statenet_pallas(x, w_obs, b_obs, w_attn, b_attn, w_main, b_main)
    out = jax.block_until_ready(out)

    ref = statenet_ref(x, w_obs, b_obs, w_attn, b_attn, w_main, b_main)
    assert out.shape == (BS, R)
    assert jnp.allclose(out, ref, atol=1e-5, rtol=1e-5), (out, ref)
    print("KERNEL_OK")
</pallas_src>

<mosaic_0001>
module attributes {stable_mosaic.version = 11 : i64} {
  func.func @statenet_kernel(%arg0: memref<16x16xf32, #tpu.memory_space<vmem>>, %arg1: memref<16x32xf32, #tpu.memory_space<vmem>>, %arg2: memref<1x32xf32, #tpu.memory_space<vmem>>, %arg3: memref<128x16xf32, #tpu.memory_space<vmem>>, %arg4: memref<1x16xf32, #tpu.memory_space<vmem>>, %arg5: memref<2x16xf32, #tpu.memory_space<vmem>>) attributes {dimension_semantics = [], scalar_prefetch = 0 : i64, scratch_operands = 0 : i64, tpu.core_type = #tpu.core_type<tc>} {
    %c0 = arith.constant 0 : index
    %c0_0 = arith.constant 0 : index
    %0 = vector.load %arg0[%c0, %c0_0] : memref<16x16xf32, #tpu.memory_space<vmem>>, vector<16x16xf32>
    %c0_1 = arith.constant 0 : index
    %c0_2 = arith.constant 0 : index
    %1 = vector.load %arg1[%c0_1, %c0_2] : memref<16x32xf32, #tpu.memory_space<vmem>>, vector<16x32xf32>
    %cst = arith.constant dense<0.000000e+00> : vector<16x32xf32>
    %2 = tpu.matmul %0, %1, %cst {dimension_numbers = #tpu.dot_dimension_numbers<[1], [0], [0], [1], [0, 0, 1, 1], [], []>} : vector<16x16xf32>, vector<16x32xf32>, vector<16x32xf32> -> vector<16x32xf32>
    %c0_3 = arith.constant 0 : index
    %c0_4 = arith.constant 0 : index
    %3 = vector.load %arg2[%c0_3, %c0_4] : memref<1x32xf32, #tpu.memory_space<vmem>>, vector<1x32xf32>
    %4 = vector.broadcast %3 : vector<1x32xf32> to vector<16x32xf32>
    %5 = arith.addf %2, %4 : vector<16x32xf32>
    %cst_5 = arith.constant 0.000000e+00 : f32
    %6 = vector.broadcast %cst_5 : f32 to vector<16x32xf32>
    %7 = arith.maximumf %5, %6 : vector<16x32xf32>
    %8 = vector.extract_strided_slice %7 {offsets = [0, 0], sizes = [8, 32], strides = [1, 1]} : vector<16x32xf32> to vector<8x32xf32>
    %9 = vector.extract_strided_slice %8 {offsets = [0, 0], sizes = [7, 32], strides = [1, 1]} : vector<8x32xf32> to vector<7x32xf32>
    %10 = vector.extract_strided_slice %8 {offsets = [7, 0], sizes = [1, 32], strides = [1, 1]} : vector<8x32xf32> to vector<1x32xf32>
    %cst_6 = arith.constant dense<0.000000e+00> : vector<32xf32>
    %11 = vector.multi_reduction <add>, %9, %cst_6 [0] : vector<7x32xf32> to vector<32xf32>
    %12 = vector.shape_cast %11 : vector<32xf32> to vector<1x32xf32>
    %cst_7 = arith.constant 7.000000e+00 : f32
    %13 = vector.broadcast %cst_7 : f32 to vector<1x32xf32>
    %14 = arith.divf %12, %13 : vector<1x32xf32>
    %cst_8 = arith.constant dense<0xFF800000> : vector<32xf32>
    %15 = vector.multi_reduction <maximumf>, %9, %cst_8 [0] : vector<7x32xf32> to vector<32xf32>
    %16 = vector.shape_cast %15 : vector<32xf32> to vector<1x32xf32>
    %cst_9 = arith.constant dense<0.000000e+00> : vector<32xf32>
    %17 = vector.multi_reduction <add>, %9, %cst_9 [0] : vector<7x32xf32> to vector<32xf32>
    %18 = vector.shape_cast %17 : vector<32xf32> to vector<1x32xf32>
    %19 = tpu.concatenate %10, %14, %16, %18 in 1 : vector<1x32xf32>, vector<1x32xf32>, vector<1x32xf32>, vector<1x32xf32> -> vector<1x128xf32>
    %20 = vector.extract_strided_slice %7 {offsets = [8, 0], sizes = [8, 32], strides = [1, 1]} : vector<16x32xf32> to vector<8x32xf32>
    %21 = vector.extract_strided_slice %20 {offsets = [0, 0], sizes = [7, 32], strides = [1, 1]} : vector<8x32xf32> to vector<7x32xf32>
    %22 = vector.extract_strided_slice %20 {offsets = [7, 0], sizes = [1, 32], strides = [1, 1]} : vector<8x32xf32> to vector<1x32xf32>
    %cst_10 = arith.constant dense<0.000000e+00> : vector<32xf32>
    %23 = vector.multi_reduction <add>, %21, %cst_10 [0] : vector<7x32xf32> to vector<32xf32>
    %24 = vector.shape_cast %23 : vector<32xf32> to vector<1x32xf32>
    %cst_11 = arith.constant 7.000000e+00 : f32
    %25 = vector.broadcast %cst_11 : f32 to vector<1x32xf32>
    %26 = arith.divf %24, %25 : vector<1x32xf32>
    %cst_12 = arith.constant dense<0xFF800000> : vector<32xf32>
    %27 = vector.multi_reduction <maximumf>, %21, %cst_12 [0] : vector<7x32xf32> to vector<32xf32>
    %28 = vector.shape_cast %27 : vector<32xf32> to vector<1x32xf32>
    %cst_13 = arith.constant dense<0.000000e+00> : vector<32xf32>
    %29 = vector.multi_reduction <add>, %21, %cst_13 [0] : vector<7x32xf32> to vector<32xf32>
    %30 = vector.shape_cast %29 : vector<32xf32> to vector<1x32xf32>
    %31 = tpu.concatenate %22, %26, %28, %30 in 1 : vector<1x32xf32>, vector<1x32xf32>, vector<1x32xf32>, vector<1x32xf32> -> vector<1x128xf32>
    %32 = tpu.concatenate %19, %31 in 0 : vector<1x128xf32>, vector<1x128xf32> -> vector<2x128xf32>
    %c0_14 = arith.constant 0 : index
    %c0_15 = arith.constant 0 : index
    %33 = vector.load %arg3[%c0_14, %c0_15] : memref<128x16xf32, #tpu.memory_space<vmem>>, vector<128x16xf32>
    %cst_16 = arith.constant dense<0.000000e+00> : vector<2x16xf32>
    %34 = tpu.matmul %32, %33, %cst_16 {dimension_numbers = #tpu.dot_dimension_numbers<[1], [0], [0], [1], [0, 0, 1, 1], [], []>} : vector<2x128xf32>, vector<128x16xf32>, vector<2x16xf32> -> vector<2x16xf32>
    %c0_17 = arith.constant 0 : index
    %c0_18 = arith.constant 0 : index
    %35 = vector.load %arg4[%c0_17, %c0_18] : memref<1x16xf32, #tpu.memory_space<vmem>>, vector<1x16xf32>
    %36 = vector.broadcast %35 : vector<1x16xf32> to vector<2x16xf32>
    %37 = arith.addf %34, %36 : vector<2x16xf32>
    %c0_19 = arith.constant 0 : index
    %c0_20 = arith.constant 0 : index
    %38 = vector.load %arg5[%c0_19, %c0_20] : memref<2x16xf32, #tpu.memory_space<vmem>>, vector<2x16xf32>
    tpu.vector_store %arg5[%c0_19, %c0_20], %37 {strides = array<i32>} : memref<2x16xf32, #tpu.memory_space<vmem>>, vector<2x16xf32>,
    return
  }
}

</mosaic_0001>

<llo_original>
// kernel: tpu_custom_call.1
$region0: #{tpu_custom_call.1}
  #allocation0 [shape = 'u32[]', space=smem, size = 0x4, offset = 0x4, fixed_abs, tag = 'smem constant byte address 0x4 - core index']
  #allocation1 [shape = 'u32[144,128]{1,0:T(1,128)}', space=vmem, size = 0x12000, scoped, tag = 'internal scratch']
  %s0 = inlined_call_operand.vmem [shape: f32[16,16], index: 0, kind: input, shape index: {}]
  %s1 = inlined_call_operand.vmem [shape: f32[16,32], index: 1, kind: input, shape index: {}]
  %s2 = inlined_call_operand.vmem [shape: f32[1,32], index: 2, kind: input, shape index: {}]
  %s3 = inlined_call_operand.vmem [shape: f32[128,16], index: 3, kind: input, shape index: {}]
  %s4 = inlined_call_operand.vmem [shape: f32[1,16], index: 4, kind: input, shape index: {}]
  %s5 = inlined_call_operand.hbm [shape: f32[2,16], index: 5, kind: output, shape index: {}]
  %s6 = sld [smem:[#allocation0]]
  $region30: #{tpu_custom_call.1} parent=0
    _
  %s8 = ssub.s32 1, %s6
  %s9 = scalar_select 0, %s8, %s6
  $region1: #{tpu_custom_call.1} parent=0
    #allocation2 [shape = 'u8[1024]{0}', space=vmem, size = 0x400, scoped, tag = 'output window, operand 0, single buffered']
    #allocation3 [shape = 's32[1]{0}', space=sflag, size = 0x4, scoped, tag = 'scoped memory for tpu_custom_call.1']
    %10 = vsyncpa [#allocation3], 0
    // Predicated region
    $region2: #{tpu_custom_call.1} parent=1 // pred_check
      _
    $region3: #{tpu_custom_call.1} parent=1 // pred_check_branch
      %12 = sbr.rel (0) target = $region5
    $region4: #{tpu_custom_call.1} parent=1 // pred_region
      _
    $region5: #{tpu_custom_call.1} parent=1 // pred_fallthru
      _
    // Predicated region
    $region6: #{tpu_custom_call.1} parent=1 // pred_check
      _
    $region7: #{tpu_custom_call.1} parent=1 // pred_check_branch
      %14 = sbr.rel (0) target = $region9
    $region8: #{tpu_custom_call.1} parent=1 // pred_region
      _
    $region9: #{tpu_custom_call.1} parent=1 // pred_fallthru
      _
    // Predicated region
    $region10: #{tpu_custom_call.1} parent=1 // pred_check
      _
    $region11: #{tpu_custom_call.1} parent=1 // pred_check_branch
      %16 = sbr.rel (0) target = $region13
    $region12: #{tpu_custom_call.1} parent=1 // pred_region
      _
    $region13: #{tpu_custom_call.1} parent=1 // pred_fallthru
      _
    // Predicated region
    $region14: #{tpu_custom_call.1} parent=1 // pred_check
      _
    $region15: #{tpu_custom_call.1} parent=1 // pred_check_branch
      %18 = sbr.rel (0) target = $region17
    $region16: #{tpu_custom_call.1} parent=1 // pred_region
      _
    $region17: #{tpu_custom_call.1} parent=1 // pred_fallthru
      _
    // Predicated region
    $region18: #{tpu_custom_call.1} parent=1 // pred_check
      _
    $region19: #{tpu_custom_call.1} parent=1 // pred_check_branch
      %20 = sbr.rel (0) target = $region21
    $region20: #{tpu_custom_call.1} parent=1 // pred_region
      _
    $region21: #{tpu_custom_call.1} parent=1 // pred_fallthru
      _
    %v21 = vld [vmem:[%s0] sm:$0xff]
    %v22 = vld [vmem:[%s0 + $0x8] sm:$0xff]
    %v23 = vld [vmem:[%s1] sm:$0xff]
    %v24 = vld [vmem:[%s1 + $0x8] sm:$0xff]
    %v25 = vld [vmem:[%s2] sm:$0x1]
    %v27 = vlaneseq
    %v28 = vshrl.u32 %v27, 7
    %v29 = vsub.s32 0, %v28
    %v30 = vrot.slane %v25, %v29
    %vm32 = vcmask 130048
    %v34 = vsel %vm32, %v21, 0
    %v37 = vsel %vm32, %v22, 0
    %39 = vmatprep.subr.mxu0 0.0
    %40 = vmatpush1.msra.mxu0 0.0
    %41 = vmatprep.subr.mxu0 0.0
    %42 = vmatpush1.msra.mxu0 0.0
    %43 = vmatprep.subr.mxu0 0.0
    %44 = vmatpush1.msra.mxu0 0.0
    %45 = vmatprep.subr.mxu0 0.0
    %46 = vmatpush1.msra.mxu0 0.0
    %47 = vmatprep.subr.mxu0 0.0
    %48 = vmatpush1.msra.mxu0 0.0
    %49 = vmatprep.subr.mxu0 0.0
    %50 = vmatpush1.msra.mxu0 0.0
    %51 = vmatprep.subr.mxu0 0.0
    %52 = vmatpush1.msra.mxu0 0.0
    %53 = vmatprep.subr.mxu0 0.0
    %54 = vmatpush1.msra.mxu0 0.0
    %55 = vmatprep.subr.mxu0 0.0
    %56 = vmatpush1.msra.mxu0 0.0
    %57 = vmatprep.subr.mxu0 0.0
    %58 = vmatpush1.msra.mxu0 0.0
    %59 = vmatprep.subr.mxu0 0.0
    %60 = vmatpush1.msra.mxu0 0.0
    %61 = vmatprep.subr.mxu0 0.0
    %62 = vmatpush1.msra.mxu0 0.0
    %63 = vmatprep.subr.mxu0 0.0
    %64 = vmatpush1.msra.mxu0 0.0
    %65 = vmatprep.subr.mxu0 0.0
    %66 = vmatpush1.msra.mxu0 0.0
    %67 = vmatprep.subr.mxu0 0.0
    %68 = vmatpush1.msra.mxu0 %v24
    %69 = vmatprep.subr.mxu0 0.0
    %70 = vmatpush1.msra.mxu0 %v23
    %71 = vmatprep.subr.mxu0 0.0
    %72 = vmatpush2.msra.mxu0 0.0
    %73 = vmatprep.subr.mxu0 0.0
    %74 = vmatpush2.msra.mxu0 0.0
    %75 = vmatprep.subr.mxu0 0.0
    %76 = vmatpush2.msra.mxu0 0.0
    %77 = vmatprep.subr.mxu0 0.0
    %78 = vmatpush2.msra.mxu0 0.0
    %79 = vmatprep.subr.mxu0 0.0
    %80 = vmatpush2.msra.mxu0 0.0
    %81 = vmatprep.subr.mxu0 0.0
    %82 = vmatpush2.msra.mxu0 0.0
    %83 = vmatprep.subr.mxu0 0.0
    %84 = vmatpush2.msra.mxu0 0.0
    %85 = vmatprep.subr.mxu0 0.0
    %86 = vmatpush2.msra.mxu0 0.0
    %87 = vmatprep.subr.mxu0 0.0
    %88 = vmatpush2.msra.mxu0 0.0
    %89 = vmatprep.subr.mxu0 0.0
    %90 = vmatpush2.msra.mxu0 0.0
    %91 = vmatprep.subr.mxu0 0.0
    %92 = vmatpush2.msra.mxu0 0.0
    %93 = vmatprep.subr.mxu0 0.0
    %94 = vmatpush2.msra.mxu0 0.0
    %95 = vmatprep.subr.mxu0 0.0
    %96 = vmatpush2.msra.mxu0 0.0
    %97 = vmatprep.subr.mxu0 0.0
    %98 = vmatpush2.msra.mxu0 0.0
    %99 = vmatprep.subr.mxu0 0.0
    %100 = vmatpush2.msra.mxu0 0.0
    %101 = vmatprep.subr.mxu0 0.0
    %102 = vmatpush2.msra.mxu0 0.0
    %103 = vmatprep.mubr.f32.mxu0 0.0
    %104 = vmatmul.mubr.f32.gmra.mxu0 %v34
    %v105 = vpop.f32.mrf.mxu0
    %v106 = vadd.f32 %v30, %v105
    %v107 = vpop.f32.mrf.mxu0
    %108 = vmatprep.mubr.f32.mxu0 0.0
    %109 = vmatmul.mubr.f32.gmra.mxu0 %v37
    %v110 = vpop.f32.mrf.mxu0
    %v111 = vadd.f32 %v30, %v110
    %v112 = vpop.f32.mrf.mxu0
    %113 = vdwg.mxu0
    %v114 = vmax.f32 %v106, 0.0
    %v115 = vmax.f32 %v111, 0.0
    %vm116 = vcmask 260096
    %v117 = vsel %vm116, %v114, 0.0
    %v118 = vrot.slane %v117, 4
    %v119 = vadd.f32 %v117, %v118
    %v120 = vrot.slane %v119, 2
    %v121 = vadd.f32 %v119, %v120
    %v122 = vrot.slane %v121, 1
    %v123 = vadd.f32 %v121, %v122
    %v124 = vrcp.pop 7.0
    %v125 = vmul.f32 %v123, %v124
    %v126 = vsel %vm116, %v114, -inf
    %v127 = vrot.slane %v126, 4
    %v128 = vmax.f32 %v126, %v127
    %v129 = vrot.slane %v128, 2
    %v130 = vmax.f32 %v128, %v129
    %v131 = vrot.slane %v130, 1
    %v132 = vmax.f32 %v130, %v131
    %134 = vrot.lane.b32.xlu0 %v125, 32
    %v135 = vpop.permute.xlu0 %134
    %138 = vrot.lane.b32.xlu0 %v132, 64
    %v139 = vpop.permute.xlu0 %138
    %142 = vrot.lane.b32.xlu0 %v123, 96
    %v143 = vpop.permute.xlu0 %142
    %vm145 = vcmask 261120
    %v146 = vsel %vm145, %v114, %v135
    %vm147 = vcmask 523264
    %v148 = vsel %vm147, %v146, %v139
    %vm149 = vcmask 785408
    %v150 = vsel %vm149, %v148, %v143
    %v151 = vsel %vm116, %v115, 0.0
    %v152 = vrot.slane %v151, 4
    %v153 = vadd.f32 %v151, %v152
    %v154 = vrot.slane %v153, 2
    %v155 = vadd.f32 %v153, %v154
    %v156 = vrot.slane %v155, 1
    %v157 = vadd.f32 %v155, %v156
    %v158 = vmul.f32 %v157, %v124
    %v159 = vsel %vm116, %v115, -inf
    %v160 = vrot.slane %v159, 4
    %v161 = vmax.f32 %v159, %v160
    %v162 = vrot.slane %v161, 2
    %v163 = vmax.f32 %v161, %v162
    %v164 = vrot.slane %v163, 1
    %v165 = vmax.f32 %v163, %v164
    %167 = vrot.lane.b32.xlu0 %v158, 32
    %v168 = vpop.permute.xlu0 %167
    %171 = vrot.lane.b32.xlu0 %v165, 64
    %v172 = vpop.permute.xlu0 %171
    %175 = vrot.lane.b32.xlu0 %v157, 96
    %v176 = vpop.permute.xlu0 %175
    %v178 = vsel %vm145, %v115, %v168
    %v179 = vsel %vm147, %v178, %v172
    %v180 = vsel %vm149, %v179, %v176
    %v182 = vrot.slane %v150, 7
    %v185 = vrot.slane %v180, 6
    %vm187 = vcmask 1040384
    %v188 = vsel %vm187, %v182, %v185
    %v189 = vld [vmem:[%s3] sm:$0xff]
    %v190 = vld [vmem:[%s3 + $0x8] sm:$0xff]
    %v191 = vld [vmem:[%s3 + $0x10] sm:$0xff]
    %v192 = vld [vmem:[%s3 + $0x18] sm:$0xff]
    %v193 = vld [vmem:[%s3 + $0x20] sm:$0xff]
    %v194 = vld [vmem:[%s3 + $0x28] sm:$0xff]
    %v195 = vld [vmem:[%s3 + $0x30] sm:$0xff]
    %v196 = vld [vmem:[%s3 + $0x38] sm:$0xff]
    %v197 = vld [vmem:[%s3 + $0x40] sm:$0xff]
    %v198 = vld [vmem:[%s3 + $0x48] sm:$0xff]
    %v199 = vld [vmem:[%s3 + $0x50] sm:$0xff]
    %v200 = vld [vmem:[%s3 + $0x58] sm:$0xff]
    %v201 = vld [vmem:[%s3 + $0x60] sm:$0xff]
    %v202 = vld [vmem:[%s3 + $0x68] sm:$0xff]
    %v203 = vld [vmem:[%s3 + $0x70] sm:$0xff]
    %v204 = vld [vmem:[%s3 + $0x78] sm:$0xff]
    %v205 = vld [vmem:[%s4] sm:$0x1]
    %v207 = vlaneseq
    %v208 = vshrl.u32 %v207, 7
    %v209 = vsub.s32 0, %v208
    %v210 = vrot.slane %v205, %v209
    %212 = vmatprep.subr.mxu0 0.0
    %213 = vmatpush1.msra.mxu0 %v204
    %214 = vmatprep.subr.mxu0 0.0
    %215 = vmatpush1.msra.mxu0 %v203
    %216 = vmatprep.subr.mxu0 0.0
    %217 = vmatpush1.msra.mxu0 %v202
    %218 = vmatprep.subr.mxu0 0.0
    %219 = vmatpush1.msra.mxu0 %v201
    %220 = vmatprep.subr.mxu0 0.0
    %221 = vmatpush1.msra.mxu0 %v200
    %222 = vmatprep.subr.mxu0 0.0
    %223 = vmatpush1.msra.mxu0 %v199
    %224 = vmatprep.subr.mxu0 0.0
    %225 = vmatpush1.msra.mxu0 %v198
    %226 = vmatprep.subr.mxu0 0.0
    %227 = vmatpush1.msra.mxu0 %v197
    %228 = vmatprep.subr.mxu0 0.0
    %229 = vmatpush1.msra.mxu0 %v196
    %230 = vmatprep.subr.mxu0 0.0
    %231 = vmatpush1.msra.mxu0 %v195
    %232 = vmatprep.subr.mxu0 0.0
    %233 = vmatpush1.msra.mxu0 %v194
    %234 = vmatprep.subr.mxu0 0.0
    %235 = vmatpush1.msra.mxu0 %v193
    %236 = vmatprep.subr.mxu0 0.0
    %237 = vmatpush1.msra.mxu0 %v192
    %238 = vmatprep.subr.mxu0 0.0
    %239 = vmatpush1.msra.mxu0 %v191
    %240 = vmatprep.subr.mxu0 0.0
    %241 = vmatpush1.msra.mxu0 %v190
    %242 = vmatprep.subr.mxu0 0.0
    %243 = vmatpush1.msra.mxu0 %v189
    %244 = vmatprep.subr.mxu0 0.0
    %245 = vmatpush2.msra.mxu0 0.0
    %246 = vmatprep.subr.mxu0 0.0
    %247 = vmatpush2.msra.mxu0 0.0
    %248 = vmatprep.subr.mxu0 0.0
    %249 = vmatpush2.msra.mxu0 0.0
    %250 = vmatprep.subr.mxu0 0.0
    %251 = vmatpush2.msra.mxu0 0.0
    %252 = vmatprep.subr.mxu0 0.0
    %253 = vmatpush2.msra.mxu0 0.0
    %254 = vmatprep.subr.mxu0 0.0
    %255 = vmatpush2.msra.mxu0 0.0
    %256 = vmatprep.subr.mxu0 0.0
    %257 = vmatpush2.msra.mxu0 0.0
    %258 = vmatprep.subr.mxu0 0.0
    %259 = vmatpush2.msra.mxu0 0.0
    %260 = vmatprep.subr.mxu0 0.0
    %261 = vmatpush2.msra.mxu0 0.0
    %262 = vmatprep.subr.mxu0 0.0
    %263 = vmatpush2.msra.mxu0 0.0
    %264 = vmatprep.subr.mxu0 0.0
    %265 = vmatpush2.msra.mxu0 0.0
    %266 = vmatprep.subr.mxu0 0.0
    %267 = vmatpush2.msra.mxu0 0.0
    %268 = vmatprep.subr.mxu0 0.0
    %269 = vmatpush2.msra.mxu0 0.0
    %270 = vmatprep.subr.mxu0 0.0
    %271 = vmatpush2.msra.mxu0 0.0
    %272 = vmatprep.subr.mxu0 0.0
    %273 = vmatpush2.msra.mxu0 0.0
    %274 = vmatprep.subr.mxu0 0.0
    %275 = vmatpush2.msra.mxu0 0.0
    %276 = vmatprep.mubr.f32.mxu0 0.0
    %277 = vmatmul.mubr.f32.gmra.mxu0 %v188
    %v278 = vpop.f32.mrf.mxu0
    %v279 = vadd.f32 %v210, %v278
    %v280 = vpop.f32.mrf.mxu0
    %281 = vdwg.mxu0
    %vm282 = vcmask 123904
    %283 = vst.msk [vmem:[#allocation2] sm:$0x3] %vm282, %v279
    // Predicated region
    $region22: #{tpu_custom_call.1} parent=1 // pred_check
      _
    $region23: #{tpu_custom_call.1} parent=1 // pred_check_branch
      %285 = sbr.rel (0) target = $region25
    $region24: #{tpu_custom_call.1} parent=1 // pred_region
      %s287 = ssub.s32 32, 32
      %288 = vsyncadd [#allocation3], %s287
      %s290 = sshll.u32 [#allocation2], 4
      %s291 = int_to_ptr.vmem [resolvable:$true] %s290
      %293 = dma.vmem_to_hbm [thread:$0]  %s291, 32, %s5, [#allocation3]
    $region25: #{tpu_custom_call.1} parent=1 // pred_fallthru
      _
    // Predicated region
    $region26: #{tpu_custom_call.1} parent=1 // pred_check
      _
    $region27: #{tpu_custom_call.1} parent=1 // pred_check_branch
      %295 = sbr.rel (0) target = $region29
    $region28: #{tpu_custom_call.1} parent=1 // pred_region
      %296 = dma.done [#allocation3], 32
    $region29: #{tpu_custom_call.1} parent=1 // pred_fallthru
      _
    %297 = vsyncpa [#allocation3], 1

</llo_original>
